<compile_context>
chip_gen: v6e
topology: v6e:2x2x1
jax: 0.10.0
libtpu: 0.0.40
codegen_flags: <defaults>
</compile_context>

<pallas_src>
import functools
from typing import NamedTuple

import jax
import jax.numpy as jnp
from jax.experimental import pallas as pl
from jax.experimental.pallas import tpu as pltpu


# --------------------------------------------------------------------------- #
# Kernel
# --------------------------------------------------------------------------- #
def swiglu_kernel(x_ref, wx_ref, wg_ref, bx_ref, bg_ref, o_ref, accx_ref, accg_ref):
    # x_ref:  (TM, TK)   input row tile (compute dtype, e.g. bf16)
    # wx_ref: (TK, TN)   "x half" weight tile   (columns 0..D-1 of the proj)
    # wg_ref: (TK, TN)   "gate half" weight tile(columns D..2D-1 of the proj)
    # bx_ref: (1, TN)    bias tile for the x half (f32)
    # bg_ref: (1, TN)    bias tile for the gate half (f32)
    # o_ref:  (TM, TN)   output tile
    # acc*:   (TM, TN)   f32 accumulators (persist across the K grid axis)
    k = pl.program_id(2)

    x = x_ref[...]
    px = jnp.dot(x, wx_ref[...], preferred_element_type=jnp.float32)
    pg = jnp.dot(x, wg_ref[...], preferred_element_type=jnp.float32)

    @pl.when(k == 0)
    def _init():
        # Direct assignment on the first K step: no broadcast-store + RMW.
        accx_ref[...] = px
        accg_ref[...] = pg

    @pl.when(k != 0)
    def _accum():
        accx_ref[...] += px
        accg_ref[...] += pg

    @pl.when(k == pl.num_programs(2) - 1)
    def _finalize():
        # Bias added here (two VPU adds on tiles already in vregs).
        xp = accx_ref[...] + bx_ref[...]
        g = accg_ref[...] + bg_ref[...]
        o_ref[...] = (g * jax.nn.sigmoid(g) * xp).astype(o_ref.dtype)


# --------------------------------------------------------------------------- #
# Helpers
# --------------------------------------------------------------------------- #
def _round_up(a, q):
    return (a + q - 1) // q * q


def _pad2(a, rows, cols):
    pr, pc = rows - a.shape[0], cols - a.shape[1]
    if pr == 0 and pc == 0:
        return a
    return jnp.pad(a, ((0, pr), (0, pc)))


def _sublane_pack(dtype):
    # Native sublane packing multiple: 8 (f32), 16 (bf16), 32 (int8/fp8).
    return max(8, 32 // jnp.dtype(dtype).itemsize)


def _balanced_tile(dim, tile_max, align):
    """Pick tile (multiple of `align`, <= tile_max) via balanced ceil-division.

    Keeps the block count of the naive cap but shrinks the tile so padding does
    not round `dim` up to a whole extra block (e.g. D=640, tk=512 -> 384 not 1024).
    Returns (tile, padded_dim) with padded_dim a multiple of tile.
    """
    dim_al = _round_up(max(int(dim), 1), align)
    tile_max = max(align, _round_up(int(tile_max), align))
    nblocks = -(-dim_al // tile_max)                    # ceil
    tile = _round_up(-(-dim_al // nblocks), align)      # ceil then align
    padded = _round_up(dim_al, tile)
    return tile, padded


# --------------------------------------------------------------------------- #
# One-time parameter preparation (hoisted out of the per-call path)
# --------------------------------------------------------------------------- #
class SwiGLUParams(NamedTuple):
    wx: jax.Array   # (dk, dn) padded, compute dtype
    wg: jax.Array   # (dk, dn) padded, compute dtype
    bx: jax.Array   # (1, dn)  f32
    bg: jax.Array   # (1, dn)  f32
    d: int
    dk: int
    dn: int
    tk: int
    tn: int


def prepare_swiglu_params(w, b, *, compute_dtype=jnp.bfloat16, tn=512, tk=512):
    """Transpose / cast / zero-pad the nn.Linear(d, 2d) weights ONCE.

    w: (2D, D) PyTorch nn.Linear weight layout (out_features, in_features)
    b: (2D,)   nn.Linear bias
    """
    w = jnp.asarray(w)
    b = jnp.asarray(b)
    two_d, d = w.shape
    assert two_d == 2 * d, (w.shape,)

    tk_eff, dk = _balanced_tile(d, tk, 128)   # K (reduction over D)
    tn_eff, dn = _balanced_tile(d, tn, 128)   # N (output D), lane-dense

    # PyTorch chunk: x_half = first output half, gate = second output half.
    wx = _pad2(w[:d, :].T.astype(compute_dtype), dk, dn)
    wg = _pad2(w[d:, :].T.astype(compute_dtype), dk, dn)
    bx = _pad2(b[:d].reshape(1, d).astype(jnp.float32), 1, dn)
    bg = _pad2(b[d:].reshape(1, d).astype(jnp.float32), 1, dn)
    return SwiGLUParams(wx, wg, bx, bg, int(d), int(dk), int(dn),
                        int(tk_eff), int(tn_eff))


# --------------------------------------------------------------------------- #
# pallas_call wrapper
# --------------------------------------------------------------------------- #
@functools.partial(
    jax.jit,
    static_argnames=("tm", "tn", "tk", "m_pad", "compute_dtype", "out_dtype",
                     "weight_buffers"),
)
def _swiglu_impl(xm, wx, wg, bx, bg, *, tm, tn, tk, m_pad, compute_dtype,
                 out_dtype, weight_buffers):
    m, d = xm.shape
    dk, dn = wx.shape
    cbytes = jnp.dtype(compute_dtype).itemsize
    obytes = jnp.dtype(out_dtype).itemsize

    xm_p = _pad2(xm.astype(compute_dtype), m_pad, dk)

    grid = (m_pad // tm, dn // tn, dk // tk)

    def _weight_spec():
        if weight_buffers is not None and weight_buffers != 2:
            return pl.BlockSpec((tk, tn), lambda i, j, k: (k, j),
                                pipeline_mode=pl.Buffered(weight_buffers))
        return pl.BlockSpec((tk, tn), lambda i, j, k: (k, j))

    wbufs = weight_buffers if (weight_buffers and weight_buffers > 2) else 2
    vmem_est = (
        2 * tm * tk * cbytes            # x tiles (double-buffered)
        + 2 * wbufs * tk * tn * cbytes  # W_x + W_g tiles
        + 2 * tm * tn * obytes          # output tiles (double-buffered)
        + 2 * tm * tn * 4               # f32 accumulators
        + 4 * tn * 4 * 2                # bias tiles
    )
    vmem_limit = int(min(64 * 1024 * 1024, max(32 * 1024 * 1024, 2 * vmem_est)))

    cost = pl.CostEstimate(
        flops=4 * m * d * d,
        transcendentals=m * d,
        bytes_accessed=m * d * cbytes + 2 * d * d * cbytes + 2 * d * 4
        + m * d * obytes,
    )

    out = pl.pallas_call(
        swiglu_kernel,
        out_shape=jax.ShapeDtypeStruct((m_pad, dn), out_dtype),
        grid_spec=pltpu.PrefetchScalarGridSpec(
            num_scalar_prefetch=0,
            grid=grid,
            in_specs=[
                pl.BlockSpec((tm, tk), lambda i, j, k: (i, k)),   # x rows
                _weight_spec(),                                   # W_x tile
                _weight_spec(),                                   # W_g tile
                pl.BlockSpec((1, tn), lambda i, j, k: (0, j)),    # b_x tile
                pl.BlockSpec((1, tn), lambda i, j, k: (0, j)),    # b_g tile
            ],
            out_specs=pl.BlockSpec((tm, tn), lambda i, j, k: (i, j)),
            scratch_shapes=[
                pltpu.VMEM((tm, tn), jnp.float32),                # acc x_half
                pltpu.VMEM((tm, tn), jnp.float32),                # acc gate
            ],
        ),
        compiler_params=pltpu.CompilerParams(
            dimension_semantics=("parallel", "parallel", "arbitrary"),
            vmem_limit_bytes=vmem_limit,
        ),
        cost_estimate=cost,
    )(xm_p, wx, wg, bx, bg)

    return out[:m, :d]


def swiglu(x, params: SwiGLUParams, *, tm=1024, weight_buffers=2):
    """SwiGLU forward: silu(gate) * x_half with [x_half | gate] = x @ W^T + b.

    x:      (..., D)
    params: output of prepare_swiglu_params (pre-transposed/padded/cast weights).
    """
    d = params.d
    assert x.shape[-1] == d, (x.shape, d)
    lead = x.shape[:-1]
    xm = x.reshape(-1, d)
    m = xm.shape[0]

    compute_dtype = jnp.dtype(params.wx.dtype)
    pack = _sublane_pack(compute_dtype)

    tm_eff, m_pad = _balanced_tile(m, tm, pack)
    tn_eff, tk_eff, dn = params.tn, params.tk, params.dn

    # Keep both v7x TensorCores busy: ensure >= 2 blocks across the parallel
    # (i, j) grid axes when the shapes allow it.
    if (m_pad // tm_eff) * (dn // tn_eff) == 1:
        if tn_eff % 256 == 0:
            tn_eff //= 2
        elif tm_eff % (2 * pack) == 0:
            tm_eff //= 2

    out = _swiglu_impl(
        xm, params.wx, params.wg, params.bx, params.bg,
        tm=tm_eff, tn=tn_eff, tk=tk_eff, m_pad=m_pad,
        compute_dtype=compute_dtype, out_dtype=jnp.dtype(x.dtype),
        weight_buffers=weight_buffers,
    )
    return out.reshape(*lead, d)


# --------------------------------------------------------------------------- #
# Reference + test
# --------------------------------------------------------------------------- #
def swiglu_ref(x, w, b):
    h = jnp.einsum("...i,oi->...o", x, w, precision=jax.lax.Precision.HIGHEST) + b
    x_part, gate = jnp.split(h, 2, axis=-1)
    return jax.nn.silu(gate) * x_part


if __name__ == "__main__":
    key = jax.random.PRNGKey(0)
    k_x, k_w, k_b = jax.random.split(key, 3)

    batch, seq, dim_in = 2, 8, 32
    x = jax.random.normal(k_x, (batch, seq, dim_in), dtype=jnp.float32)
    # Deterministic "Linear(dim_in, 2*dim_in)" params (PyTorch layout: (out, in)).
    w = jax.random.normal(k_w, (2 * dim_in, dim_in), dtype=jnp.float32) * 0.1
    b = jax.random.normal(k_b, (2 * dim_in,), dtype=jnp.float32) * 0.1

    ref = jax.block_until_ready(swiglu_ref(x, w, b))

    # Default path: bf16 MXU operands, f32 accumulation (one-time weight prep).
    params_bf16 = prepare_swiglu_params(w, b)  # compute_dtype=bf16 by default
    out_bf16 = jax.block_until_ready(swiglu(x, params_bf16))
    assert out_bf16.shape == (batch, seq, dim_in), out_bf16.shape
    # bf16 operands vs f32 HIGHEST reference -> expected precision loss.
    assert jnp.allclose(out_bf16, ref, atol=2e-2, rtol=2e-2), "bf16 mismatch vs reference"

    # f32 operand path (tight tolerance) as a correctness cross-check.
    params_f32 = prepare_swiglu_params(w, b, compute_dtype=jnp.float32)
    out_f32 = jax.block_until_ready(swiglu(x, params_f32))
    assert jnp.allclose(out_f32, ref, atol=1e-4, rtol=1e-4), "f32 mismatch vs reference"

    print("KERNEL_OK")
</pallas_src>

<mosaic_0001>
module attributes {stable_mosaic.version = 11 : i64} {
  func.func @swiglu_kernel(%arg0: i32, %arg1: i32, %arg2: i32, %arg3: memref<16x128xbf16, #tpu.memory_space<vmem>>, %arg4: memref<128x128xbf16, #tpu.memory_space<vmem>>, %arg5: memref<128x128xbf16, #tpu.memory_space<vmem>>, %arg6: memref<1x128xf32, #tpu.memory_space<vmem>>, %arg7: memref<1x128xf32, #tpu.memory_space<vmem>>, %arg8: memref<16x128xf32, #tpu.memory_space<vmem>>, %arg9: memref<16x128xf32, #tpu.memory_space<vmem>>, %arg10: memref<16x128xf32, #tpu.memory_space<vmem>>) attributes {dimension_semantics = [#tpu.dimension_semantics<parallel>, #tpu.dimension_semantics<parallel>, #tpu.dimension_semantics<arbitrary>], iteration_bounds = array<i64: 1, 1, 1>, scalar_prefetch = 0 : i64, scratch_operands = 2 : i64, tpu.core_type = #tpu.core_type<tc>, window_params = [{transform_indices = @transform_0, window_bounds = array<i64: 16, 128>}, {transform_indices = @transform_1, window_bounds = array<i64: 128, 128>}, {transform_indices = @transform_2, window_bounds = array<i64: 128, 128>}, {transform_indices = @transform_3, window_bounds = array<i64: 1, 128>}, {transform_indices = @transform_4, window_bounds = array<i64: 1, 128>}, {transform_indices = @transform_5, window_bounds = array<i64: 16, 128>}]} {
    %c0 = arith.constant 0 : index
    %c0_0 = arith.constant 0 : index
    %0 = vector.load %arg3[%c0, %c0_0] : memref<16x128xbf16, #tpu.memory_space<vmem>>, vector<16x128xbf16>
    %c0_1 = arith.constant 0 : index
    %c0_2 = arith.constant 0 : index
    %1 = vector.load %arg4[%c0_1, %c0_2] : memref<128x128xbf16, #tpu.memory_space<vmem>>, vector<128x128xbf16>
    %cst = arith.constant dense<0.000000e+00> : vector<16x128xf32>
    %2 = tpu.matmul %0, %1, %cst {dimension_numbers = #tpu.dot_dimension_numbers<[1], [0], [0], [1], [0, 0, 1, 1], [], []>} : vector<16x128xbf16>, vector<128x128xbf16>, vector<16x128xf32> -> vector<16x128xf32>
    %c0_3 = arith.constant 0 : index
    %c0_4 = arith.constant 0 : index
    %3 = vector.load %arg5[%c0_3, %c0_4] : memref<128x128xbf16, #tpu.memory_space<vmem>>, vector<128x128xbf16>
    %cst_5 = arith.constant dense<0.000000e+00> : vector<16x128xf32>
    %4 = tpu.matmul %0, %3, %cst_5 {dimension_numbers = #tpu.dot_dimension_numbers<[1], [0], [0], [1], [0, 0, 1, 1], [], []>} : vector<16x128xbf16>, vector<128x128xbf16>, vector<16x128xf32> -> vector<16x128xf32>
    %c0_i32 = arith.constant 0 : i32
    %5 = arith.cmpi eq, %arg2, %c0_i32 : i32
    %6 = arith.extui %5 : i1 to i32
    %c0_i32_6 = arith.constant 0 : i32
    %7 = arith.cmpi ne, %6, %c0_i32_6 : i32
    scf.if %7 {
      %c0_11 = arith.constant 0 : index
      %c0_12 = arith.constant 0 : index
      %14 = vector.load %arg9[%c0_11, %c0_12] : memref<16x128xf32, #tpu.memory_space<vmem>>, vector<16x128xf32>
      tpu.vector_store %arg9[%c0_11, %c0_12], %2 {strides = array<i32>} : memref<16x128xf32, #tpu.memory_space<vmem>>, vector<16x128xf32>,
      %c0_13 = arith.constant 0 : index
      %c0_14 = arith.constant 0 : index
      %15 = vector.load %arg10[%c0_13, %c0_14] : memref<16x128xf32, #tpu.memory_space<vmem>>, vector<16x128xf32>
      tpu.vector_store %arg10[%c0_13, %c0_14], %4 {strides = array<i32>} : memref<16x128xf32, #tpu.memory_space<vmem>>, vector<16x128xf32>,
    } else {
    }
    %c0_i32_7 = arith.constant 0 : i32
    %8 = arith.cmpi ne, %arg2, %c0_i32_7 : i32
    %9 = arith.extui %8 : i1 to i32
    %c0_i32_8 = arith.constant 0 : i32
    %10 = arith.cmpi ne, %9, %c0_i32_8 : i32
    scf.if %10 {
      %c0_11 = arith.constant 0 : index
      %c0_12 = arith.constant 0 : index
      %14 = vector.load %arg9[%c0_11, %c0_12] : memref<16x128xf32, #tpu.memory_space<vmem>>, vector<16x128xf32>
      %15 = arith.addf %14, %2 : vector<16x128xf32>
      %c0_13 = arith.constant 0 : index
      %c0_14 = arith.constant 0 : index
      %16 = vector.load %arg9[%c0_13, %c0_14] : memref<16x128xf32, #tpu.memory_space<vmem>>, vector<16x128xf32>
      tpu.vector_store %arg9[%c0_13, %c0_14], %15 {strides = array<i32>} : memref<16x128xf32, #tpu.memory_space<vmem>>, vector<16x128xf32>,
      %c0_15 = arith.constant 0 : index
      %c0_16 = arith.constant 0 : index
      %17 = vector.load %arg10[%c0_15, %c0_16] : memref<16x128xf32, #tpu.memory_space<vmem>>, vector<16x128xf32>
      %18 = arith.addf %17, %4 : vector<16x128xf32>
      %c0_17 = arith.constant 0 : index
      %c0_18 = arith.constant 0 : index
      %19 = vector.load %arg10[%c0_17, %c0_18] : memref<16x128xf32, #tpu.memory_space<vmem>>, vector<16x128xf32>
      tpu.vector_store %arg10[%c0_17, %c0_18], %18 {strides = array<i32>} : memref<16x128xf32, #tpu.memory_space<vmem>>, vector<16x128xf32>,
    } else {
    }
    %c0_i32_9 = arith.constant 0 : i32
    %11 = arith.cmpi eq, %arg2, %c0_i32_9 : i32
    %12 = arith.extui %11 : i1 to i32
    %c0_i32_10 = arith.constant 0 : i32
    %13 = arith.cmpi ne, %12, %c0_i32_10 : i32
    scf.if %13 {
      %c0_11 = arith.constant 0 : index
      %c0_12 = arith.constant 0 : index
      %14 = vector.load %arg9[%c0_11, %c0_12] : memref<16x128xf32, #tpu.memory_space<vmem>>, vector<16x128xf32>
      %c0_13 = arith.constant 0 : index
      %c0_14 = arith.constant 0 : index
      %15 = vector.load %arg6[%c0_13, %c0_14] : memref<1x128xf32, #tpu.memory_space<vmem>>, vector<1x128xf32>
      %16 = vector.broadcast %15 : vector<1x128xf32> to vector<16x128xf32>
      %17 = arith.addf %14, %16 : vector<16x128xf32>
      %c0_15 = arith.constant 0 : index
      %c0_16 = arith.constant 0 : index
      %18 = vector.load %arg10[%c0_15, %c0_16] : memref<16x128xf32, #tpu.memory_space<vmem>>, vector<16x128xf32>
      %c0_17 = arith.constant 0 : index
      %c0_18 = arith.constant 0 : index
      %19 = vector.load %arg7[%c0_17, %c0_18] : memref<1x128xf32, #tpu.memory_space<vmem>>, vector<1x128xf32>
      %20 = vector.broadcast %19 : vector<1x128xf32> to vector<16x128xf32>
      %21 = arith.addf %18, %20 : vector<16x128xf32>
      %22 = arith.negf %21 : vector<16x128xf32>
      %23 = math.exp %22 : vector<16x128xf32>
      %cst_19 = arith.constant 1.000000e+00 : f32
      %24 = vector.broadcast %cst_19 : f32 to vector<16x128xf32>
      %25 = arith.addf %24, %23 : vector<16x128xf32>
      %26 = arith.divf %24, %25 : vector<16x128xf32>
      %27 = arith.mulf %21, %26 : vector<16x128xf32>
      %28 = arith.mulf %27, %17 : vector<16x128xf32>
      %c0_20 = arith.constant 0 : index
      %c0_21 = arith.constant 0 : index
      %29 = vector.load %arg8[%c0_20, %c0_21] : memref<16x128xf32, #tpu.memory_space<vmem>>, vector<16x128xf32>
      tpu.vector_store %arg8[%c0_20, %c0_21], %28 {strides = array<i32>} : memref<16x128xf32, #tpu.memory_space<vmem>>, vector<16x128xf32>,
    } else {
    }
    return
  }
  func.func @transform_0(%arg0: i32, %arg1: i32, %arg2: i32) -> (i32, i32) {
    %c0_i32 = arith.constant 0 : i32
    return %arg0, %arg2 : i32, i32
  }
  func.func @transform_1(%arg0: i32, %arg1: i32, %arg2: i32) -> (i32, i32) {
    %c0_i32 = arith.constant 0 : i32
    return %arg2, %arg1 : i32, i32
  }
  func.func @transform_2(%arg0: i32, %arg1: i32, %arg2: i32) -> (i32, i32) {
    %c0_i32 = arith.constant 0 : i32
    return %arg2, %arg1 : i32, i32
  }
  func.func @transform_3(%arg0: i32, %arg1: i32, %arg2: i32) -> (i32, i32) {
    %c0_i32 = arith.constant 0 : i32
    %c0_i32_0 = arith.constant 0 : i32
    return %c0_i32, %arg1 : i32, i32
  }
  func.func @transform_4(%arg0: i32, %arg1: i32, %arg2: i32) -> (i32, i32) {
    %c0_i32 = arith.constant 0 : i32
    %c0_i32_0 = arith.constant 0 : i32
    return %c0_i32, %arg1 : i32, i32
  }
  func.func @transform_5(%arg0: i32, %arg1: i32, %arg2: i32) -> (i32, i32) {
    %c0_i32 = arith.constant 0 : i32
    return %arg0, %arg1 : i32, i32
  }
}

</mosaic_0001>

<llo_original>
// kernel: _swiglu_impl.1
$region0: #{_swiglu_impl.1}
  #allocation0 [shape = 'u32[]', space=smem, size = 0x4, offset = 0x4, fixed_abs, tag = 'smem constant byte address 0x4 - core index']
  #allocation1 [shape = 'u32[144,128]{1,0:T(1,128)}', space=vmem, size = 0x12000, scoped, tag = 'internal scratch']
  #allocation2 [shape = 'f32[16,128]{1,0:T(8,128)}', space=vmem, size = 0x2000, scoped, tag = 'scratch operand']
  #allocation3 [shape = 'f32[16,128]{1,0:T(8,128)}', space=vmem, size = 0x2000, scoped, tag = 'scratch operand']
  %s0 = inlined_call_operand.vmem [shape: bf16[16,128], index: 0, kind: input, shape index: {}]
  %s1 = inlined_call_operand.hbm [shape: bf16[128,128], index: 1, kind: input, shape index: {}]
  %s2 = inlined_call_operand.hbm [shape: bf16[128,128], index: 2, kind: input, shape index: {}]
  %s3 = inlined_call_operand.vmem [shape: f32[1,128], index: 3, kind: input, shape index: {}]
  %s4 = inlined_call_operand.vmem [shape: f32[1,128], index: 4, kind: input, shape index: {}]
  %s5 = inlined_call_operand.hbm [shape: f32[16,128], index: 5, kind: output, shape index: {}]
  %s6 = sld [smem:[#allocation0]]
  $region50: #{_swiglu_impl.1} parent=0
    _
  %s8 = ssub.s32 1, %s6
  %s9 = scalar_select 0, %s8, %s6
  $region1: #{_swiglu_impl.1} parent=0
    #allocation4 [shape = 'u8[32768]{0}', space=vmem, size = 0x8000, scoped, tag = 'input window, operand 1, single buffered']
    #allocation5 [shape = 's32[1]{0}', space=sflag, size = 0x4, scoped, tag = 'scoped memory for _swiglu_impl.1']
    #allocation6 [shape = 's32[1]{0}', space=sflag, size = 0x4, scoped, tag = 'scoped memory for _swiglu_impl.1']
    #allocation7 [shape = 'u8[32768]{0}', space=vmem, size = 0x8000, scoped, tag = 'input window, operand 2, single buffered']
    #allocation8 [shape = 's32[1]{0}', space=sflag, size = 0x4, scoped, tag = 'scoped memory for _swiglu_impl.1']
    #allocation9 [shape = 'u8[8192]{0}', space=vmem, size = 0x2000, scoped, tag = 'output window, operand 0, single buffered']
    %10 = vsyncpa [#allocation5], 0
    %11 = vsyncpa [#allocation8], 0
    %12 = vsyncpa [#allocation6], 0
    // Predicated region
    $region2: #{_swiglu_impl.1} parent=1 // pred_check
      _
    $region3: #{_swiglu_impl.1} parent=1 // pred_check_branch
      %14 = sbr.rel (0) target = $region5
    $region4: #{_swiglu_impl.1} parent=1 // pred_region
      _
    $region5: #{_swiglu_impl.1} parent=1 // pred_fallthru
      _
    // Predicated region
    $region6: #{_swiglu_impl.1} parent=1 // pred_check
      _
    $region7: #{_swiglu_impl.1} parent=1 // pred_check_branch
      %16 = sbr.rel (0) target = $region9
    $region8: #{_swiglu_impl.1} parent=1 // pred_region
      %s18 = ssub.s32 1024, 1024
      %19 = vsyncadd [#allocation5], %s18
      %s20 = sshll.u32 [#allocation4], 4
      %s21 = int_to_ptr.vmem [resolvable:$true] %s20
      %26 = dma.hbm_to_vmem [thread:$0]  %s1, 1024, %s21, [#allocation5], 64, 64, 4
    $region9: #{_swiglu_impl.1} parent=1 // pred_fallthru
      _
    // Predicated region
    $region10: #{_swiglu_impl.1} parent=1 // pred_check
      _
    $region11: #{_swiglu_impl.1} parent=1 // pred_check_branch
      %28 = sbr.rel (0) target = $region13
    $region12: #{_swiglu_impl.1} parent=1 // pred_region
      %s30 = ssub.s32 1024, 1024
      %31 = vsyncadd [#allocation8], %s30
      %s32 = sshll.u32 [#allocation7], 4
      %s33 = int_to_ptr.vmem [resolvable:$true] %s32
      %38 = dma.hbm_to_vmem [thread:$0]  %s2, 1024, %s33, [#allocation8], 64, 64, 4
    $region13: #{_swiglu_impl.1} parent=1 // pred_fallthru
      _
    // Predicated region
    $region14: #{_swiglu_impl.1} parent=1 // pred_check
      _
    $region15: #{_swiglu_impl.1} parent=1 // pred_check_branch
      %40 = sbr.rel (0) target = $region17
    $region16: #{_swiglu_impl.1} parent=1 // pred_region
      _
    $region17: #{_swiglu_impl.1} parent=1 // pred_fallthru
      _
    // Predicated region
    $region18: #{_swiglu_impl.1} parent=1 // pred_check
      _
    $region19: #{_swiglu_impl.1} parent=1 // pred_check_branch
      %42 = sbr.rel (0) target = $region21
    $region20: #{_swiglu_impl.1} parent=1 // pred_region
      _
    $region21: #{_swiglu_impl.1} parent=1 // pred_fallthru
      _
    // Predicated region
    $region22: #{_swiglu_impl.1} parent=1 // pred_check
      _
    $region23: #{_swiglu_impl.1} parent=1 // pred_check_branch
      %44 = sbr.rel (0) target = $region25
    $region24: #{_swiglu_impl.1} parent=1 // pred_region
      %45 = dma.done [#allocation5], 1024
    $region25: #{_swiglu_impl.1} parent=1 // pred_fallthru
      _
    // Predicated region
    $region26: #{_swiglu_impl.1} parent=1 // pred_check
      _
    $region27: #{_swiglu_impl.1} parent=1 // pred_check_branch
      %47 = sbr.rel (0) target = $region29
    $region28: #{_swiglu_impl.1} parent=1 // pred_region
      %48 = dma.done [#allocation8], 1024
    $region29: #{_swiglu_impl.1} parent=1 // pred_fallthru
      _
    %v50 = vld [vmem:[%s0] sm:$0xf]
    %v51 = vld [vmem:[%s0 + $0x4] sm:$0xf]
    %v52 = vld [vmem:[#allocation4] sm:$0xf]
    %v53 = vld [vmem:[#allocation4 + $0x4] sm:$0xf]
    %v54 = vld [vmem:[#allocation4 + $0x8] sm:$0xf]
    %v55 = vld [vmem:[#allocation4 + $0xc] sm:$0xf]
    %v56 = vld [vmem:[#allocation4 + $0x10] sm:$0xf]
    %v57 = vld [vmem:[#allocation4 + $0x14] sm:$0xf]
    %v58 = vld [vmem:[#allocation4 + $0x18] sm:$0xf]
    %v59 = vld [vmem:[#allocation4 + $0x1c] sm:$0xf]
    %v60 = vld [vmem:[#allocation4 + $0x20] sm:$0xf]
    %v61 = vld [vmem:[#allocation4 + $0x24] sm:$0xf]
    %v62 = vld [vmem:[#allocation4 + $0x28] sm:$0xf]
    %v63 = vld [vmem:[#allocation4 + $0x2c] sm:$0xf]
    %v64 = vld [vmem:[#allocation4 + $0x30] sm:$0xf]
    %v65 = vld [vmem:[#allocation4 + $0x34] sm:$0xf]
    %v66 = vld [vmem:[#allocation4 + $0x38] sm:$0xf]
    %v67 = vld [vmem:[#allocation4 + $0x3c] sm:$0xf]
    %v70 = vunpack.c.l.b16 %v50
    %v71 = vunpack.c.l.b16 %v51
    %v72 = vpack.c.b16 %v71, %v70
    %v90 = vunpack.c.l.b16 %v52
    %v91 = vunpack.c.l.b16 %v53
    %v92 = vunpack.c.l.b16 %v54
    %v93 = vunpack.c.l.b16 %v55
    %v94 = vunpack.c.l.b16 %v56
    %v95 = vunpack.c.l.b16 %v57
    %v96 = vunpack.c.l.b16 %v58
    %v97 = vunpack.c.l.b16 %v59
    %v98 = vunpack.c.l.b16 %v60
    %v99 = vunpack.c.l.b16 %v61
    %v100 = vunpack.c.l.b16 %v62
    %v101 = vunpack.c.l.b16 %v63
    %v102 = vunpack.c.l.b16 %v64
    %v103 = vunpack.c.l.b16 %v65
    %v104 = vunpack.c.l.b16 %v66
    %v105 = vunpack.c.l.b16 %v67
    %v106 = vpack.c.b16 %v91, %v90
    %v107 = vpack.c.b16 %v93, %v92
    %v108 = vpack.c.b16 %v95, %v94
    %v109 = vpack.c.b16 %v97, %v96
    %v110 = vpack.c.b16 %v99, %v98
    %v111 = vpack.c.b16 %v101, %v100
    %v112 = vpack.c.b16 %v103, %v102
    %v113 = vpack.c.b16 %v105, %v104
    %122 = vmatprep.subr.bf16.mxu0 0
    %123 = vmatpush1.bf16.msra.mxu0 %v113
    %124 = vmatprep.subr.bf16.mxu0 0
    %125 = vmatpush1.bf16.msra.mxu0 %v112
    %126 = vmatprep.subr.bf16.mxu0 0
    %127 = vmatpush1.bf16.msra.mxu0 %v111
    %128 = vmatprep.subr.bf16.mxu0 0
    %129 = vmatpush1.bf16.msra.mxu0 %v110
    %130 = vmatprep.subr.bf16.mxu0 0
    %131 = vmatpush1.bf16.msra.mxu0 %v109
    %132 = vmatprep.subr.bf16.mxu0 0
    %133 = vmatpush1.bf16.msra.mxu0 %v108
    %134 = vmatprep.subr.bf16.mxu0 0
    %135 = vmatpush1.bf16.msra.mxu0 %v107
    %136 = vmatprep.subr.bf16.mxu0 0
    %137 = vmatpush1.bf16.msra.mxu0 %v106
    %138 = vmatprep.subr.bf16.mxu0 0
    %139 = vmatpush2.bf16.msra.mxu0 0
    %140 = vmatprep.subr.bf16.mxu0 0
    %141 = vmatpush2.bf16.msra.mxu0 0
    %142 = vmatprep.subr.bf16.mxu0 0
    %143 = vmatpush2.bf16.msra.mxu0 0
    %144 = vmatprep.subr.bf16.mxu0 0
    %145 = vmatpush2.bf16.msra.mxu0 0
    %146 = vmatprep.subr.bf16.mxu0 0
    %147 = vmatpush2.bf16.msra.mxu0 0
    %148 = vmatprep.subr.bf16.mxu0 0
    %149 = vmatpush2.bf16.msra.mxu0 0
    %150 = vmatprep.subr.bf16.mxu0 0
    %151 = vmatpush2.bf16.msra.mxu0 0
    %152 = vmatprep.subr.bf16.mxu0 0
    %153 = vmatpush2.bf16.msra.mxu0 0
    %154 = vmatprep.mubr.bf16.mxu0 0
    %155 = vmatmul.mubr.bf16.gmra.mxu0 %v72
    %v156 = vpop.f32.mrf.mxu0
    %v157 = vadd.f32 0.0, %v156
    %v158 = vpop.f32.mrf.mxu0
    %v159 = vpop.f32.mrf.mxu0
    %v160 = vadd.f32 0.0, %v159
    %v161 = vpop.f32.mrf.mxu0
    %162 = vdwg.mxu0
    %v163 = vld [vmem:[#allocation7] sm:$0xf]
    %v164 = vld [vmem:[#allocation7 + $0x4] sm:$0xf]
    %v165 = vld [vmem:[#allocation7 + $0x8] sm:$0xf]
    %v166 = vld [vmem:[#allocation7 + $0xc] sm:$0xf]
    %v167 = vld [vmem:[#allocation7 + $0x10] sm:$0xf]
    %v168 = vld [vmem:[#allocation7 + $0x14] sm:$0xf]
    %v169 = vld [vmem:[#allocation7 + $0x18] sm:$0xf]
    %v170 = vld [vmem:[#allocation7 + $0x1c] sm:$0xf]
    %v171 = vld [vmem:[#allocation7 + $0x20] sm:$0xf]
    %v172 = vld [vmem:[#allocation7 + $0x24] sm:$0xf]
    %v173 = vld [vmem:[#allocation7 + $0x28] sm:$0xf]
    %v174 = vld [vmem:[#allocation7 + $0x2c] sm:$0xf]
    %v175 = vld [vmem:[#allocation7 + $0x30] sm:$0xf]
    %v176 = vld [vmem:[#allocation7 + $0x34] sm:$0xf]
    %v177 = vld [vmem:[#allocation7 + $0x38] sm:$0xf]
    %v178 = vld [vmem:[#allocation7 + $0x3c] sm:$0xf]
    %v195 = vunpack.c.l.b16 %v163
    %v196 = vunpack.c.l.b16 %v164
    %v197 = vunpack.c.l.b16 %v165
    %v198 = vunpack.c.l.b16 %v166
    %v199 = vunpack.c.l.b16 %v167
    %v200 = vunpack.c.l.b16 %v168
    %v201 = vunpack.c.l.b16 %v169
    %v202 = vunpack.c.l.b16 %v170
    %v203 = vunpack.c.l.b16 %v171
    %v204 = vunpack.c.l.b16 %v172
    %v205 = vunpack.c.l.b16 %v173
    %v206 = vunpack.c.l.b16 %v174
    %v207 = vunpack.c.l.b16 %v175
    %v208 = vunpack.c.l.b16 %v176
    %v209 = vunpack.c.l.b16 %v177
    %v210 = vunpack.c.l.b16 %v178
    %v211 = vpack.c.b16 %v196, %v195
    %v212 = vpack.c.b16 %v198, %v197
    %v213 = vpack.c.b16 %v200, %v199
    %v214 = vpack.c.b16 %v202, %v201
    %v215 = vpack.c.b16 %v204, %v203
    %v216 = vpack.c.b16 %v206, %v205
    %v217 = vpack.c.b16 %v208, %v207
    %v218 = vpack.c.b16 %v210, %v209
    %227 = vmatprep.subr.bf16.mxu0 0
    %228 = vmatpush1.bf16.msra.mxu0 %v218
    %229 = vmatprep.subr.bf16.mxu0 0
    %230 = vmatpush1.bf16.msra.mxu0 %v217
    %231 = vmatprep.subr.bf16.mxu0 0
    %232 = vmatpush1.bf16.msra.mxu0 %v216
    %233 = vmatprep.subr.bf16.mxu0 0
    %234 = vmatpush1.bf16.msra.mxu0 %v215
    %235 = vmatprep.subr.bf16.mxu0 0
    %236 = vmatpush1.bf16.msra.mxu0 %v214
    %237 = vmatprep.subr.bf16.mxu0 0
    %238 = vmatpush1.bf16.msra.mxu0 %v213
    %239 = vmatprep.subr.bf16.mxu0 0
    %240 = vmatpush1.bf16.msra.mxu0 %v212
    %241 = vmatprep.subr.bf16.mxu0 0
    %242 = vmatpush1.bf16.msra.mxu0 %v211
    %243 = vmatprep.subr.bf16.mxu0 0
    %244 = vmatpush2.bf16.msra.mxu0 0
    %245 = vmatprep.subr.bf16.mxu0 0
    %246 = vmatpush2.bf16.msra.mxu0 0
    %247 = vmatprep.subr.bf16.mxu0 0
    %248 = vmatpush2.bf16.msra.mxu0 0
    %249 = vmatprep.subr.bf16.mxu0 0
    %250 = vmatpush2.bf16.msra.mxu0 0
    %251 = vmatprep.subr.bf16.mxu0 0
    %252 = vmatpush2.bf16.msra.mxu0 0
    %253 = vmatprep.subr.bf16.mxu0 0
    %254 = vmatpush2.bf16.msra.mxu0 0
    %255 = vmatprep.subr.bf16.mxu0 0
    %256 = vmatpush2.bf16.msra.mxu0 0
    %257 = vmatprep.subr.bf16.mxu0 0
    %258 = vmatpush2.bf16.msra.mxu0 0
    %259 = vmatprep.mubr.bf16.mxu0 0
    %260 = vmatmul.mubr.bf16.gmra.mxu0 %v72
    %v261 = vpop.f32.mrf.mxu0
    %v262 = vadd.f32 0.0, %v261
    %v263 = vpop.f32.mrf.mxu0
    %v264 = vpop.f32.mrf.mxu0
    %v265 = vadd.f32 0.0, %v264
    %v266 = vpop.f32.mrf.mxu0
    %267 = vdwg.mxu0
    %p268 = scmp.eq.s32.totalorder 0, 0
    // Predicated region
    $region30: #{_swiglu_impl.1} parent=1 // pred_check
      %p269 = pneg %p268
    $region31: #{_swiglu_impl.1} parent=1 // pred_check_branch
      %271 = sbr.rel (%p269) target = $region33
    $region32: #{_swiglu_impl.1} parent=1 // pred_region
      %272 = vst [vmem:[#allocation2] sm:$0xff] %v157
      %273 = vst [vmem:[#allocation2 + $0x8] sm:$0xff] %v160
      %274 = vst [vmem:[#allocation3] sm:$0xff] %v262
      %275 = vst [vmem:[#allocation3 + $0x8] sm:$0xff] %v265
    $region33: #{_swiglu_impl.1} parent=1 // pred_fallthru
      _
    %p276 = scmp.ne.s32.totalorder 0, 0
    // Predicated region
    $region34: #{_swiglu_impl.1} parent=1 // pred_check
      %p277 = pneg %p276
    $region35: #{_swiglu_impl.1} parent=1 // pred_check_branch
      %279 = sbr.rel (%p277) target = $region37
    $region36: #{_swiglu_impl.1} parent=1 // pred_region
      %v280 = vld [vmem:[#allocation2] sm:$0xff]
      %v281 = vld [vmem:[#allocation2 + $0x8] sm:$0xff]
      %v282 = vadd.f32 %v280, %v157
      %v283 = vadd.f32 %v281, %v160
      %284 = vst [vmem:[#allocation2] sm:$0xff] %v282
      %285 = vst [vmem:[#allocation2 + $0x8] sm:$0xff] %v283
      %v286 = vld [vmem:[#allocation3] sm:$0xff]
      %v287 = vld [vmem:[#allocation3 + $0x8] sm:$0xff]
      %v288 = vadd.f32 %v286, %v262
      %v289 = vadd.f32 %v287, %v265
      %290 = vst [vmem:[#allocation3] sm:$0xff] %v288
      %291 = vst [vmem:[#allocation3 + $0x8] sm:$0xff] %v289
    $region37: #{_swiglu_impl.1} parent=1 // pred_fallthru
      _
    // Predicated region
    $region38: #{_swiglu_impl.1} parent=1 // pred_check
      %p292 = pneg %p268
    $region39: #{_swiglu_impl.1} parent=1 // pred_check_branch
      %294 = sbr.rel (%p292) target = $region41
    $region40: #{_swiglu_impl.1} parent=1 // pred_region
      %v295 = vld [vmem:[#allocation2] sm:$0xff]
      %v296 = vld [vmem:[#allocation2 + $0x8] sm:$0xff]
      %v297 = vld [vmem:[%s3] sm:$0x1]
      %v299 = vlaneseq
      %v300 = vshrl.u32 %v299, 7
      %v301 = vsub.s32 0, %v300
      %v302 = vrot.slane %v297, %v301
      %v304 = vadd.f32 %v295, %v302
      %v305 = vadd.f32 %v296, %v302
      %v306 = vld [vmem:[#allocation3] sm:$0xff]
      %v307 = vld [vmem:[#allocation3 + $0x8] sm:$0xff]
      %v308 = vld [vmem:[%s4] sm:$0x1]
      %v310 = vlaneseq
      %v311 = vshrl.u32 %v310, 7
      %v312 = vsub.s32 0, %v311
      %v313 = vrot.slane %v308, %v312
      %v315 = vadd.f32 %v306, %v313
      %v316 = vadd.f32 %v307, %v313
      %v317 = vxor.u32 %v315, 2147483648
      %v318 = vxor.u32 %v316, 2147483648
      %v319 = vmul.f32 %v317, 1.442695
      %v320 = vpow.pop %v319
      %v321 = vmul.f32 %v318, 1.442695
      %v322 = vpow.pop %v321
      %v323 = vadd.f32 %v320, 1.0
      %v324 = vadd.f32 %v322, 1.0
      %v325 = vrcp.pop %v323
      %v326 = vmul.f32 1.0, %v325
      %v327 = vrcp.pop %v324
      %v328 = vmul.f32 1.0, %v327
      %v329 = vmul.f32 %v315, %v326
      %v330 = vmul.f32 %v316, %v328
      %v331 = vmul.f32 %v329, %v304
      %v332 = vmul.f32 %v330, %v305
      %333 = vst [vmem:[#allocation9] sm:$0xff] %v331
      %334 = vst [vmem:[#allocation9 + $0x8] sm:$0xff] %v332
    $region41: #{_swiglu_impl.1} parent=1 // pred_fallthru
      _
    // Predicated region
    $region42: #{_swiglu_impl.1} parent=1 // pred_check
      _
    $region43: #{_swiglu_impl.1} parent=1 // pred_check_branch
      %336 = sbr.rel (0) target = $region45
    $region44: #{_swiglu_impl.1} parent=1 // pred_region
      %s338 = ssub.s32 256, 256
      %339 = vsyncadd [#allocation6], %s338
      %s340 = sshll.u32 [#allocation9], 4
      %s341 = int_to_ptr.vmem [resolvable:$true] %s340
      %346 = dma.vmem_to_hbm [thread:$0]  %s341, 256, %s5, [#allocation6], 128, 128, 8
    $region45: #{_swiglu_impl.1} parent=1 // pred_fallthru
      _
    // Predicated region
    $region46: #{_swiglu_impl.1} parent=1 // pred_check
      _
    $region47: #{_swiglu_impl.1} parent=1 // pred_check_branch
      %348 = sbr.rel (0) target = $region49
    $region48: #{_swiglu_impl.1} parent=1 // pred_region
      %349 = dma.done [#allocation6], 256
    $region49: #{_swiglu_impl.1} parent=1 // pred_fallthru
      _
    %350 = vsyncpa [#allocation5], 1
    %351 = vsyncpa [#allocation8], 1
    %352 = vsyncpa [#allocation6], 1

</llo_original>
